<compile_context>
chip_gen: v6e
topology: v6e:2x2x1
jax: 0.10.0
libtpu: 0.0.40
codegen_flags: <defaults>
</compile_context>

<pallas_src>
import jax
import jax.numpy as jnp
from jax.experimental import pallas as pl
from jax.experimental.pallas import tpu as pltpu


def _softmax_exp_rows(params_ref):
    """params_ref is (3, K): rows = [pi, mu, sigma]. Returns (1, K) rows."""
    pi = params_ref[0:1, :]
    mu = params_ref[1:2, :]
    sg = params_ref[2:3, :]
    # numerically-stable softmax over the lane axis
    m = jnp.max(pi, axis=-1, keepdims=True)
    e = jnp.exp(pi - m)
    denom = jnp.sum(e, axis=-1, keepdims=True)
    p = e * pl.reciprocal(denom, approx=False)   # exact: keep 1e-6 tolerance
    return p, mu, jnp.exp(sg)


def _gmm_packed_kernel(params_ref, out_ref):
    # params_ref : (3, K) f32 in VMEM
    # out_ref    : (3, TILE_R, 128) f32 — lane-dense packed view of the three
    #              row-major (B, K) outputs (rows of identical tiled data).
    _, tile_r, lanes = out_ref.shape
    k = params_ref.shape[-1]
    reps = lanes // k                       # static; this path requires 128 % K == 0
    p, mu, es = _softmax_exp_rows(params_ref)
    p_row = jnp.tile(p, (1, reps))          # (1, 128)
    m_row = jnp.tile(mu, (1, reps))         # (1, 128)
    s_row = jnp.tile(es, (1, reps))         # (1, 128)
    # Full-vreg, unmasked stores (lane-dense, sublane-broadcast).
    out_ref[0] = jnp.broadcast_to(p_row, (tile_r, lanes))
    out_ref[1] = jnp.broadcast_to(m_row, (tile_r, lanes))
    out_ref[2] = jnp.broadcast_to(s_row, (tile_r, lanes))


def _gmm_rows_kernel(params_ref, out_ref):
    # Fallback when K does not divide 128.
    # params_ref : (3, K) f32, out_ref : (3, TILE_B, K) f32 (fused outputs).
    _, tile_b, k = out_ref.shape
    p, mu, es = _softmax_exp_rows(params_ref)
    out_ref[0] = jnp.broadcast_to(p, (tile_b, k))
    out_ref[1] = jnp.broadcast_to(mu, (tile_b, k))
    out_ref[2] = jnp.broadcast_to(es, (tile_b, k))


def _pick_tile(n_rows, max_rows):
    """Tile size: full extent if it fits, else a multiple of 8 <= max_rows."""
    t = min(max_rows, n_rows)
    if t == n_rows:
        return t
    return max(8, (t // 8) * 8)


def gmm_forward(like, pi, mu, sigma, *, max_tile_rows=1024):
    """Pallas equivalent of GMM.forward(like)."""
    B = like.shape[0]
    K = pi.shape[-1]
    # Fuse the three (1, K) params into one (3, K) input.
    params = jnp.concatenate(
        [pi.reshape(1, K), mu.reshape(1, K), sigma.reshape(1, K)], axis=0
    ).astype(jnp.float32)

    if 128 % K == 0:
        # Lane-dense packed path: the flat row-major (B, K) stream is the
        # K-vector repeated B times; every 128-lane row of that stream is the
        # K-vector tiled 128/K times (identical for all rows).
        lanes = 128
        total = B * K
        n_rows = max(pl.cdiv(total, lanes), 1)          # padded row count
        tile_r = _pick_tile(n_rows, max_tile_rows)      # <= ~1.5 MiB / block
        grid = (pl.cdiv(n_rows, tile_r),)

        out = pl.pallas_call(
            _gmm_packed_kernel,
            out_shape=jax.ShapeDtypeStruct((3, n_rows, lanes), jnp.float32),
            grid=grid,
            in_specs=[pl.BlockSpec((3, K), lambda i: (0, 0))],
            out_specs=pl.BlockSpec((3, tile_r, lanes), lambda i: (0, i, 0)),
            compiler_params=pltpu.CompilerParams(
                dimension_semantics=("parallel",)),
        )(params)

        flat = out.reshape(3, n_rows * lanes)           # flat packed stream
        pi_out = flat[0, :total].reshape(B, K)
        mu_out = flat[1, :total].reshape(B, K)
        sigma_out = flat[2, :total].reshape(B, K)
        return pi_out, mu_out, sigma_out

    # Generic fallback: fused (3, B, K) output, grid over batch rows.
    tile_b = _pick_tile(B, max_tile_rows)
    grid = (pl.cdiv(B, tile_b),)
    out = pl.pallas_call(
        _gmm_rows_kernel,
        out_shape=jax.ShapeDtypeStruct((3, B, K), jnp.float32),
        grid=grid,
        in_specs=[pl.BlockSpec((3, K), lambda i: (0, 0))],
        out_specs=pl.BlockSpec((3, tile_b, K), lambda i: (0, i, 0)),
        compiler_params=pltpu.CompilerParams(
            dimension_semantics=("parallel",)),
    )(params)
    return out[0], out[1], out[2]


def init_gmm_params(key, n_gaussians):
    """Deterministic parameter init matching GMM.__init__ shapes."""
    pi = jnp.ones((1, n_gaussians), jnp.float32)                 # torch.ones
    mu = jax.random.normal(key, (1, n_gaussians), jnp.float32)   # .normal_()
    sigma = jnp.ones((1, n_gaussians), jnp.float32)              # torch.ones
    return pi, mu, sigma


def _reference(like, pi, mu, sigma):
    B = like.shape[0]
    K = pi.shape[-1]
    return (jnp.broadcast_to(jax.nn.softmax(pi, axis=-1), (B, K)),
            jnp.broadcast_to(mu, (B, K)),
            jnp.broadcast_to(jnp.exp(sigma), (B, K)))


if __name__ == "__main__":
    key = jax.random.PRNGKey(0)
    k_mu, k_like = jax.random.split(key)

    # --- case 1: K divides 128 (lane-dense packed path), small smoke test ---
    n_gaussians, batch = 8, 4
    pi, mu, sigma = init_gmm_params(k_mu, n_gaussians)
    like = jax.random.normal(k_like, (batch, 16), jnp.float32)

    outs = gmm_forward(like, pi, mu, sigma)
    jax.block_until_ready(outs)
    refs = _reference(like, pi, mu, sigma)
    for o, r in zip(outs, refs):
        assert o.shape == (batch, n_gaussians)
        assert jnp.allclose(o, r, atol=1e-6)

    # --- case 2: larger batch, exercises lane-padding slice in the wrapper ---
    like2 = jax.random.normal(k_like, (300, 16), jnp.float32)
    outs2 = gmm_forward(like2, pi, mu, sigma)
    jax.block_until_ready(outs2)
    refs2 = _reference(like2, pi, mu, sigma)
    for o, r in zip(outs2, refs2):
        assert o.shape == (300, n_gaussians)
        assert jnp.allclose(o, r, atol=1e-6)

    # --- case 3: K does not divide 128 (generic fused fallback path) ---
    n_g3 = 12
    pi3, mu3, sigma3 = init_gmm_params(k_mu, n_g3)
    like3 = jax.random.normal(k_like, (5, 16), jnp.float32)
    outs3 = gmm_forward(like3, pi3, mu3, sigma3)
    jax.block_until_ready(outs3)
    refs3 = _reference(like3, pi3, mu3, sigma3)
    for o, r in zip(outs3, refs3):
        assert o.shape == (5, n_g3)
        assert jnp.allclose(o, r, atol=1e-6)

    print("KERNEL_OK")
</pallas_src>

<mosaic_0001>
module attributes {stable_mosaic.version = 11 : i64} {
  func.func @_gmm_packed_kernel(%arg0: i32, %arg1: memref<3x8xf32, #tpu.memory_space<vmem>>, %arg2: memref<3x1x128xf32, #tpu.memory_space<vmem>>) attributes {dimension_semantics = [#tpu.dimension_semantics<parallel>], iteration_bounds = array<i64: 1>, scalar_prefetch = 0 : i64, scratch_operands = 0 : i64, tpu.core_type = #tpu.core_type<tc>, window_params = [{pipeline_mode = #tpu.pipeline_mode<synchronous>, transform_indices = @transform_0, window_bounds = array<i64: 3, 8>}, {transform_indices = @transform_1, window_bounds = array<i64: 3, 1, 128>}]} {
    %c0 = arith.constant 0 : index
    %c0_0 = arith.constant 0 : index
    %0 = vector.load %arg1[%c0, %c0_0] : memref<3x8xf32, #tpu.memory_space<vmem>>, vector<1x8xf32>
    %c1 = arith.constant 1 : index
    %c0_1 = arith.constant 0 : index
    %1 = vector.load %arg1[%c1, %c0_1] : memref<3x8xf32, #tpu.memory_space<vmem>>, vector<1x8xf32>
    %c2 = arith.constant 2 : index
    %c0_2 = arith.constant 0 : index
    %2 = vector.load %arg1[%c2, %c0_2] : memref<3x8xf32, #tpu.memory_space<vmem>>, vector<1x8xf32>
    %cst = arith.constant dense<0xFF800000> : vector<1xf32>
    %3 = vector.multi_reduction <maximumf>, %0, %cst [1] : vector<1x8xf32> to vector<1xf32>
    %4 = vector.shape_cast %3 : vector<1xf32> to vector<1x1xf32>
    %5 = vector.broadcast %4 : vector<1x1xf32> to vector<1x8xf32>
    %6 = arith.subf %0, %5 : vector<1x8xf32>
    %7 = math.exp %6 : vector<1x8xf32>
    %cst_3 = arith.constant dense<0.000000e+00> : vector<1xf32>
    %8 = vector.multi_reduction <add>, %7, %cst_3 [1] : vector<1x8xf32> to vector<1xf32>
    %9 = vector.shape_cast %8 : vector<1xf32> to vector<1x1xf32>
    %10 = tpu.reciprocal %9 : vector<1x1xf32> -> vector<1x1xf32>
    %11 = vector.broadcast %10 : vector<1x1xf32> to vector<1x8xf32>
    %12 = arith.mulf %7, %11 : vector<1x8xf32>
    %13 = math.exp %2 : vector<1x8xf32>
    %14 = tpu.concatenate %12, %12, %12, %12, %12, %12, %12, %12, %12, %12, %12, %12, %12, %12, %12, %12 in 1 : vector<1x8xf32>, vector<1x8xf32>, vector<1x8xf32>, vector<1x8xf32>, vector<1x8xf32>, vector<1x8xf32>, vector<1x8xf32>, vector<1x8xf32>, vector<1x8xf32>, vector<1x8xf32>, vector<1x8xf32>, vector<1x8xf32>, vector<1x8xf32>, vector<1x8xf32>, vector<1x8xf32>, vector<1x8xf32> -> vector<1x128xf32>
    %15 = tpu.concatenate %1, %1, %1, %1, %1, %1, %1, %1, %1, %1, %1, %1, %1, %1, %1, %1 in 1 : vector<1x8xf32>, vector<1x8xf32>, vector<1x8xf32>, vector<1x8xf32>, vector<1x8xf32>, vector<1x8xf32>, vector<1x8xf32>, vector<1x8xf32>, vector<1x8xf32>, vector<1x8xf32>, vector<1x8xf32>, vector<1x8xf32>, vector<1x8xf32>, vector<1x8xf32>, vector<1x8xf32>, vector<1x8xf32> -> vector<1x128xf32>
    %16 = tpu.concatenate %13, %13, %13, %13, %13, %13, %13, %13, %13, %13, %13, %13, %13, %13, %13, %13 in 1 : vector<1x8xf32>, vector<1x8xf32>, vector<1x8xf32>, vector<1x8xf32>, vector<1x8xf32>, vector<1x8xf32>, vector<1x8xf32>, vector<1x8xf32>, vector<1x8xf32>, vector<1x8xf32>, vector<1x8xf32>, vector<1x8xf32>, vector<1x8xf32>, vector<1x8xf32>, vector<1x8xf32>, vector<1x8xf32> -> vector<1x128xf32>
    %c0_4 = arith.constant 0 : index
    %c0_5 = arith.constant 0 : index
    %c0_6 = arith.constant 0 : index
    %17 = vector.load %arg2[%c0_4, %c0_5, %c0_6] : memref<3x1x128xf32, #tpu.memory_space<vmem>>, vector<1x1x128xf32>
    %18 = vector.shape_cast %17 : vector<1x1x128xf32> to vector<1x128xf32>
    %19 = vector.shape_cast %14 : vector<1x128xf32> to vector<1x1x128xf32>
    tpu.vector_store %arg2[%c0_4, %c0_5, %c0_6], %19 {strides = array<i32>} : memref<3x1x128xf32, #tpu.memory_space<vmem>>, vector<1x1x128xf32>,
    %c1_7 = arith.constant 1 : index
    %c0_8 = arith.constant 0 : index
    %c0_9 = arith.constant 0 : index
    %20 = vector.load %arg2[%c1_7, %c0_8, %c0_9] : memref<3x1x128xf32, #tpu.memory_space<vmem>>, vector<1x1x128xf32>
    %21 = vector.shape_cast %20 : vector<1x1x128xf32> to vector<1x128xf32>
    %22 = vector.shape_cast %15 : vector<1x128xf32> to vector<1x1x128xf32>
    tpu.vector_store %arg2[%c1_7, %c0_8, %c0_9], %22 {strides = array<i32>} : memref<3x1x128xf32, #tpu.memory_space<vmem>>, vector<1x1x128xf32>,
    %c2_10 = arith.constant 2 : index
    %c0_11 = arith.constant 0 : index
    %c0_12 = arith.constant 0 : index
    %23 = vector.load %arg2[%c2_10, %c0_11, %c0_12] : memref<3x1x128xf32, #tpu.memory_space<vmem>>, vector<1x1x128xf32>
    %24 = vector.shape_cast %23 : vector<1x1x128xf32> to vector<1x128xf32>
    %25 = vector.shape_cast %16 : vector<1x128xf32> to vector<1x1x128xf32>
    tpu.vector_store %arg2[%c2_10, %c0_11, %c0_12], %25 {strides = array<i32>} : memref<3x1x128xf32, #tpu.memory_space<vmem>>, vector<1x1x128xf32>,
    return
  }
  func.func @transform_0(%arg0: i32) -> (i32, i32) {
    %c0_i32 = arith.constant 0 : i32
    %c0_i32_0 = arith.constant 0 : i32
    %c0_i32_1 = arith.constant 0 : i32
    return %c0_i32, %c0_i32_0 : i32, i32
  }
  func.func @transform_1(%arg0: i32) -> (i32, i32, i32) {
    %c0_i32 = arith.constant 0 : i32
    %c0_i32_0 = arith.constant 0 : i32
    %c0_i32_1 = arith.constant 0 : i32
    return %c0_i32, %arg0, %c0_i32_0 : i32, i32, i32
  }
}

</mosaic_0001>

<llo_original>
// kernel: tpu_custom_call.1
$region0: #{tpu_custom_call.1}
  #allocation0 [shape = 'u32[]', space=smem, size = 0x4, offset = 0x4, fixed_abs, tag = 'smem constant byte address 0x4 - core index']
  #allocation1 [shape = 'u32[144,128]{1,0:T(1,128)}', space=vmem, size = 0x12000, scoped, tag = 'internal scratch']
  %s0 = inlined_call_operand.hbm [shape: f32[3,8], index: 0, kind: input, shape index: {}]
  %s1 = inlined_call_operand.hbm [shape: f32[3,1,128], index: 1, kind: output, shape index: {}]
  %s2 = sld [smem:[#allocation0]]
  $region18: #{tpu_custom_call.1} parent=0
    _
  %s4 = ssub.s32 1, %s2
  %s5 = scalar_select 0, %s4, %s2
  $region1: #{tpu_custom_call.1} parent=0
    #allocation2 [shape = 'u8[2048]{0}', space=vmem, size = 0x800, scoped, tag = 'input window, operand 0, single buffered']
    #allocation3 [shape = 's32[1]{0}', space=sflag, size = 0x4, scoped, tag = 'scoped memory for tpu_custom_call.1']
    #allocation4 [shape = 's32[1]{0}', space=sflag, size = 0x4, scoped, tag = 'scoped memory for tpu_custom_call.1']
    #allocation5 [shape = 'u8[1536]{0}', space=vmem, size = 0x800, scoped, tag = 'output window, operand 0, single buffered']
    %6 = vsyncpa [#allocation3], 0
    %7 = vsyncpa [#allocation4], 0
    // Predicated region
    $region2: #{tpu_custom_call.1} parent=1 // pred_check
      _
    $region3: #{tpu_custom_call.1} parent=1 // pred_check_branch
      %9 = sbr.rel (0) target = $region5
    $region4: #{tpu_custom_call.1} parent=1 // pred_region
      %s11 = ssub.s32 64, 64
      %12 = vsyncadd [#allocation3], %s11
      %s14 = sshll.u32 [#allocation2], 4
      %s15 = int_to_ptr.vmem [resolvable:$true] %s14
      %17 = dma.hbm_to_vmem [thread:$0]  %s0, 64, %s15, [#allocation3]
    $region5: #{tpu_custom_call.1} parent=1 // pred_fallthru
      _
    // Predicated region
    $region6: #{tpu_custom_call.1} parent=1 // pred_check
      _
    $region7: #{tpu_custom_call.1} parent=1 // pred_check_branch
      %19 = sbr.rel (0) target = $region9
    $region8: #{tpu_custom_call.1} parent=1 // pred_region
      %20 = dma.done [#allocation3], 64
    $region9: #{tpu_custom_call.1} parent=1 // pred_fallthru
      _
    %v21 = vld [vmem:[#allocation2] sm:$0x1]
    %v22 = vld [vmem:[#allocation2 + $0x1] sm:$0x1]
    %v23 = vld [vmem:[#allocation2 + $0x2] sm:$0x1]
    %vm24 = vcmask 57344
    %v25 = vsel %vm24, %v21, -inf
    %26 = vmax.xlane.f32.xlu0 %v25
    %v27 = vpop.xlane.xlu0 %26
    %v28 = vsub.f32 %v21, %v27
    %v29 = vmul.f32 %v28, 1.442695
    %v30 = vpow.pop %v29
    %v31 = vsel %vm24, %v30, 0.0
    %32 = vadd.xlane.f32.xlu0 %v31
    %v33 = vpop.xlane.xlu0 %32
    %v34 = vrcp.pop %v33
    %v35 = vmul.f32 %v30, %v34
    %v36 = vmul.f32 %v23, 1.442695
    %v37 = vpow.pop %v36
    %39 = vrot.lane.b32.xlu0 %v35, 8
    %v40 = vpop.permute.xlu0 %39
    %42 = vrot.lane.b32.xlu0 %v35, 16
    %v43 = vpop.permute.xlu0 %42
    %45 = vrot.lane.b32.xlu0 %v35, 24
    %v46 = vpop.permute.xlu0 %45
    %48 = vrot.lane.b32.xlu0 %v35, 32
    %v49 = vpop.permute.xlu0 %48
    %51 = vrot.lane.b32.xlu0 %v35, 40
    %v52 = vpop.permute.xlu0 %51
    %54 = vrot.lane.b32.xlu0 %v35, 48
    %v55 = vpop.permute.xlu0 %54
    %57 = vrot.lane.b32.xlu0 %v35, 56
    %v58 = vpop.permute.xlu0 %57
    %60 = vrot.lane.b32.xlu0 %v35, 64
    %v61 = vpop.permute.xlu0 %60
    %63 = vrot.lane.b32.xlu0 %v35, 72
    %v64 = vpop.permute.xlu0 %63
    %66 = vrot.lane.b32.xlu0 %v35, 80
    %v67 = vpop.permute.xlu0 %66
    %69 = vrot.lane.b32.xlu0 %v35, 88
    %v70 = vpop.permute.xlu0 %69
    %72 = vrot.lane.b32.xlu0 %v35, 96
    %v73 = vpop.permute.xlu0 %72
    %75 = vrot.lane.b32.xlu0 %v35, 104
    %v76 = vpop.permute.xlu0 %75
    %78 = vrot.lane.b32.xlu0 %v35, 112
    %v79 = vpop.permute.xlu0 %78
    %81 = vrot.lane.b32.xlu0 %v35, 120
    %v82 = vpop.permute.xlu0 %81
    %vm84 = vcmask 64512
    %v85 = vsel %vm84, %v35, %v40
    %vm86 = vcmask 130048
    %v87 = vsel %vm86, %v85, %v43
    %vm88 = vcmask 195584
    %v89 = vsel %vm88, %v87, %v46
    %vm90 = vcmask 261120
    %v91 = vsel %vm90, %v89, %v49
    %vm92 = vcmask 326656
    %v93 = vsel %vm92, %v91, %v52
    %vm94 = vcmask 392192
    %v95 = vsel %vm94, %v93, %v55
    %vm96 = vcmask 457728
    %v97 = vsel %vm96, %v95, %v58
    %vm98 = vcmask 523264
    %v99 = vsel %vm98, %v97, %v61
    %vm100 = vcmask 588800
    %v101 = vsel %vm100, %v99, %v64
    %vm102 = vcmask 654336
    %v103 = vsel %vm102, %v101, %v67
    %vm104 = vcmask 719872
    %v105 = vsel %vm104, %v103, %v70
    %vm106 = vcmask 785408
    %v107 = vsel %vm106, %v105, %v73
    %vm108 = vcmask 850944
    %v109 = vsel %vm108, %v107, %v76
    %vm110 = vcmask 916480
    %v111 = vsel %vm110, %v109, %v79
    %vm112 = vcmask 982016
    %v113 = vsel %vm112, %v111, %v82
    %115 = vrot.lane.b32.xlu0 %v22, 8
    %v116 = vpop.permute.xlu0 %115
    %118 = vrot.lane.b32.xlu0 %v22, 16
    %v119 = vpop.permute.xlu0 %118
    %121 = vrot.lane.b32.xlu0 %v22, 24
    %v122 = vpop.permute.xlu0 %121
    %124 = vrot.lane.b32.xlu0 %v22, 32
    %v125 = vpop.permute.xlu0 %124
    %127 = vrot.lane.b32.xlu0 %v22, 40
    %v128 = vpop.permute.xlu0 %127
    %130 = vrot.lane.b32.xlu0 %v22, 48
    %v131 = vpop.permute.xlu0 %130
    %133 = vrot.lane.b32.xlu0 %v22, 56
    %v134 = vpop.permute.xlu0 %133
    %136 = vrot.lane.b32.xlu0 %v22, 64
    %v137 = vpop.permute.xlu0 %136
    %139 = vrot.lane.b32.xlu0 %v22, 72
    %v140 = vpop.permute.xlu0 %139
    %142 = vrot.lane.b32.xlu0 %v22, 80
    %v143 = vpop.permute.xlu0 %142
    %145 = vrot.lane.b32.xlu0 %v22, 88
    %v146 = vpop.permute.xlu0 %145
    %148 = vrot.lane.b32.xlu0 %v22, 96
    %v149 = vpop.permute.xlu0 %148
    %151 = vrot.lane.b32.xlu0 %v22, 104
    %v152 = vpop.permute.xlu0 %151
    %154 = vrot.lane.b32.xlu0 %v22, 112
    %v155 = vpop.permute.xlu0 %154
    %157 = vrot.lane.b32.xlu0 %v22, 120
    %v158 = vpop.permute.xlu0 %157
    %v160 = vsel %vm84, %v22, %v116
    %v161 = vsel %vm86, %v160, %v119
    %v162 = vsel %vm88, %v161, %v122
    %v163 = vsel %vm90, %v162, %v125
    %v164 = vsel %vm92, %v163, %v128
    %v165 = vsel %vm94, %v164, %v131
    %v166 = vsel %vm96, %v165, %v134
    %v167 = vsel %vm98, %v166, %v137
    %v168 = vsel %vm100, %v167, %v140
    %v169 = vsel %vm102, %v168, %v143
    %v170 = vsel %vm104, %v169, %v146
    %v171 = vsel %vm106, %v170, %v149
    %v172 = vsel %vm108, %v171, %v152
    %v173 = vsel %vm110, %v172, %v155
    %v174 = vsel %vm112, %v173, %v158
    %176 = vrot.lane.b32.xlu0 %v37, 8
    %v177 = vpop.permute.xlu0 %176
    %179 = vrot.lane.b32.xlu0 %v37, 16
    %v180 = vpop.permute.xlu0 %179
    %182 = vrot.lane.b32.xlu0 %v37, 24
    %v183 = vpop.permute.xlu0 %182
    %185 = vrot.lane.b32.xlu0 %v37, 32
    %v186 = vpop.permute.xlu0 %185
    %188 = vrot.lane.b32.xlu0 %v37, 40
    %v189 = vpop.permute.xlu0 %188
    %191 = vrot.lane.b32.xlu0 %v37, 48
    %v192 = vpop.permute.xlu0 %191
    %194 = vrot.lane.b32.xlu0 %v37, 56
    %v195 = vpop.permute.xlu0 %194
    %197 = vrot.lane.b32.xlu0 %v37, 64
    %v198 = vpop.permute.xlu0 %197
    %200 = vrot.lane.b32.xlu0 %v37, 72
    %v201 = vpop.permute.xlu0 %200
    %203 = vrot.lane.b32.xlu0 %v37, 80
    %v204 = vpop.permute.xlu0 %203
    %206 = vrot.lane.b32.xlu0 %v37, 88
    %v207 = vpop.permute.xlu0 %206
    %209 = vrot.lane.b32.xlu0 %v37, 96
    %v210 = vpop.permute.xlu0 %209
    %212 = vrot.lane.b32.xlu0 %v37, 104
    %v213 = vpop.permute.xlu0 %212
    %215 = vrot.lane.b32.xlu0 %v37, 112
    %v216 = vpop.permute.xlu0 %215
    %218 = vrot.lane.b32.xlu0 %v37, 120
    %v219 = vpop.permute.xlu0 %218
    %v221 = vsel %vm84, %v37, %v177
    %v222 = vsel %vm86, %v221, %v180
    %v223 = vsel %vm88, %v222, %v183
    %v224 = vsel %vm90, %v223, %v186
    %v225 = vsel %vm92, %v224, %v189
    %v226 = vsel %vm94, %v225, %v192
    %v227 = vsel %vm96, %v226, %v195
    %v228 = vsel %vm98, %v227, %v198
    %v229 = vsel %vm100, %v228, %v201
    %v230 = vsel %vm102, %v229, %v204
    %v231 = vsel %vm104, %v230, %v207
    %v232 = vsel %vm106, %v231, %v210
    %v233 = vsel %vm108, %v232, %v213
    %v234 = vsel %vm110, %v233, %v216
    %v235 = vsel %vm112, %v234, %v219
    %236 = vst [vmem:[#allocation5] sm:$0x1] %v113
    %s237 = scalar_lea.vmem [#allocation5], 1
    %238 = vst [vmem:[%s237] sm:$0x1] %v174
    %s239 = scalar_lea.vmem [#allocation5], 2
    %240 = vst [vmem:[%s239] sm:$0x1] %v235
    // Predicated region
    $region10: #{tpu_custom_call.1} parent=1 // pred_check
      _
    $region11: #{tpu_custom_call.1} parent=1 // pred_check_branch
      %242 = sbr.rel (0) target = $region13
    $region12: #{tpu_custom_call.1} parent=1 // pred_region
      %s244 = ssub.s32 48, 48
      %245 = vsyncadd [#allocation4], %s244
      %s246 = sshll.u32 [#allocation5], 4
      %s247 = int_to_ptr.vmem [resolvable:$true] %s246
      %252 = dma.vmem_to_hbm [thread:$0]  %s247, 48, %s1, [#allocation4], 16, 16, 1
    $region13: #{tpu_custom_call.1} parent=1 // pred_fallthru
      _
    // Predicated region
    $region14: #{tpu_custom_call.1} parent=1 // pred_check
      _
    $region15: #{tpu_custom_call.1} parent=1 // pred_check_branch
      %254 = sbr.rel (0) target = $region17
    $region16: #{tpu_custom_call.1} parent=1 // pred_region
      %255 = dma.done [#allocation4], 48
    $region17: #{tpu_custom_call.1} parent=1 // pred_fallthru
      _
    %256 = vsyncpa [#allocation3], 1
    %257 = vsyncpa [#allocation4], 1

</llo_original>
